<compile_context>
chip_gen: v6e
topology: v6e:2x2x1
jax: 0.10.0
libtpu: 0.0.40
codegen_flags: <defaults>
</compile_context>

<pallas_src>
import numpy as np
import jax
import jax.numpy as jnp
from jax.experimental import pallas as pl
from jax.experimental.pallas import tpu as pltpu


def gaussian_kernel_2d(size: int = 3, sigma: float = 1.0) -> np.ndarray:
    """Mirrors Smoothing.gaussian_kernel (torch.meshgrid default 'ij' indexing)."""
    axis = np.arange(-size // 2 + 1.0, size // 2 + 1.0, dtype=np.float64)
    x, y = np.meshgrid(axis, axis, indexing="ij")
    k = np.exp(-(x ** 2 + y ** 2) / (2.0 * sigma ** 2))
    return (k / k.sum()).astype(np.float32)


def _gaussian_taps_1d(size: int, sigma: float):
    """1-D taps g such that outer(g, g) equals the 2-D Gaussian kernel exactly
    (the kernel is separable), baked into the kernel as Python floats."""
    axis = np.arange(-size // 2 + 1.0, size // 2 + 1.0, dtype=np.float64)
    g = np.exp(-(axis ** 2) / (2.0 * sigma ** 2))
    g = g / g.sum()
    return [float(v) for v in g]


def _make_smooth_kernel(ksize: int, taps, H: int, W: int, pad: int):
    """Pallas kernel body.  Each grid step gets a (TB, H, W) block of image
    planes (depthwise conv => planes are independent).  Zero-padding is done
    once into a VMEM scratch, then a separable horizontal+vertical pass."""

    def kernel(x_ref, o_ref, xp_ref):
        # Zero the padded scratch (halo) and copy the block interior once,
        # casting to f32 a single time (hoisted out of the tap loops).
        xp_ref[...] = jnp.zeros_like(xp_ref)
        xp_ref[:, pad:pad + H, pad:pad + W] = x_ref[...].astype(jnp.float32)
        xp = xp_ref[...]                                  # (TB, H+2p, W+2p)

        # Horizontal (lane-direction) pass -> (TB, H+2p, W)
        t = taps[0] * xp[:, :, 0:W]
        for j in range(1, ksize):
            t = t + taps[j] * xp[:, :, j:j + W]

        # Vertical (sublane-direction) pass -> (TB, H, W)
        out = taps[0] * t[:, 0:H, :]
        for i in range(1, ksize):
            out = out + taps[i] * t[:, i:i + H, :]

        o_ref[...] = out.astype(o_ref.dtype)

    return kernel


def smoothing(image: jax.Array, size: int = 3, sigma: float = 1.0) -> jax.Array:
    """Equivalent of Smoothing.forward: depthwise conv2d (groups=3) with a
    Gaussian kernel, padding = size // 2, NCHW layout."""
    N, C, H, W = image.shape
    assert C == 3, "Smoothing uses groups=3 (3-channel images)"
    pad = size // 2
    Hp, Wp = H + 2 * pad, W + 2 * pad
    taps = _gaussian_taps_1d(size, sigma)

    # Depthwise conv => every (n, c) plane is independent: flatten to planes.
    NC = N * C
    x = image.reshape(NC, H, W)

    # ---- pick planes-per-block TB (grid coarsening) -----------------------
    # Budget the double-buffered in/out blocks + f32 padded scratch to a few
    # MiB so the default scoped-VMEM limit works on every generation
    # (16 MiB v5e / 32 MiB v6e, v7x).
    itemsize = jnp.dtype(image.dtype).itemsize
    per_plane = 2 * (2 * H * W * itemsize) + Hp * Wp * 4
    budget = 6 * 1024 * 1024
    tb_cap = max(1, budget // per_plane)
    if NC >= 2:
        # Keep >= 2 grid steps so the "parallel" axis can use both v7x cores.
        tb_cap = min(tb_cap, NC // 2)
    TB = 1
    for d in range(1, NC + 1):
        if NC % d == 0 and d <= tb_cap:
            TB = d
    grid = (NC // TB,)
    # TODO(synk): for very large H/W (one plane alone exceeding a few MiB),
    # tile H into row strips with a 2*pad halo and raise vmem_limit_bytes.

    kern = _make_smooth_kernel(size, taps, H, W, pad)
    out = pl.pallas_call(
        kern,
        out_shape=jax.ShapeDtypeStruct((NC, H, W), image.dtype),
        grid=grid,
        in_specs=[pl.BlockSpec((TB, H, W), lambda i: (i, 0, 0))],
        out_specs=pl.BlockSpec((TB, H, W), lambda i: (i, 0, 0)),
        scratch_shapes=[pltpu.VMEM((TB, Hp, Wp), jnp.float32)],
        compiler_params=pltpu.CompilerParams(
            dimension_semantics=("parallel",)),
    )(x)
    return out.reshape(N, C, H, W)


if __name__ == "__main__":
    key = jax.random.PRNGKey(0)
    # NCHW: batch=2, channels=3 (groups=3 requirement), 16x16 spatial.
    image = jax.random.uniform(key, (2, 3, 16, 16), dtype=jnp.float32)

    out = smoothing(image, size=3, sigma=1.0)
    out = jax.block_until_ready(out)

    # Independent reference: depthwise conv via lax.conv_general_dilated with
    # the full 2-D Gaussian kernel (as in the PyTorch module).
    k = jnp.asarray(gaussian_kernel_2d(3, 1.0))
    w = jnp.broadcast_to(k[None, None], (3, 1, 3, 3))  # OIHW, groups=3
    ref = jax.lax.conv_general_dilated(
        image, w, window_strides=(1, 1), padding=((1, 1), (1, 1)),
        feature_group_count=3,
        dimension_numbers=("NCHW", "OIHW", "NCHW"))
    np.testing.assert_allclose(np.asarray(out), np.asarray(ref),
                               rtol=1e-5, atol=1e-5)
    print("KERNEL_OK")
</pallas_src>

<mosaic_0001>
module attributes {stable_mosaic.version = 11 : i64} {
  func.func @kernel(%arg0: i32, %arg1: memref<3x16x16xf32, #tpu.memory_space<vmem>>, %arg2: memref<3x16x16xf32, #tpu.memory_space<vmem>>, %arg3: memref<3x18x18xf32, #tpu.memory_space<vmem>>) attributes {dimension_semantics = [#tpu.dimension_semantics<parallel>], iteration_bounds = array<i64: 2>, scalar_prefetch = 0 : i64, scratch_operands = 1 : i64, tpu.core_type = #tpu.core_type<tc>, window_params = [{transform_indices = @transform_0, window_bounds = array<i64: 3, 16, 16>}, {transform_indices = @transform_1, window_bounds = array<i64: 3, 16, 16>}]} {
    %cst = arith.constant 0.000000e+00 : f32
    %0 = vector.broadcast %cst : f32 to vector<3x18x18xf32>
    %c0 = arith.constant 0 : index
    %c0_0 = arith.constant 0 : index
    %c0_1 = arith.constant 0 : index
    %1 = vector.load %arg3[%c0, %c0_0, %c0_1] : memref<3x18x18xf32, #tpu.memory_space<vmem>>, vector<3x18x18xf32>
    tpu.vector_store %arg3[%c0, %c0_0, %c0_1], %0 {strides = array<i32>} : memref<3x18x18xf32, #tpu.memory_space<vmem>>, vector<3x18x18xf32>,
    %c0_2 = arith.constant 0 : index
    %c0_3 = arith.constant 0 : index
    %c0_4 = arith.constant 0 : index
    %2 = vector.load %arg1[%c0_2, %c0_3, %c0_4] : memref<3x16x16xf32, #tpu.memory_space<vmem>>, vector<3x16x16xf32>
    %c0_5 = arith.constant 0 : index
    %c1 = arith.constant 1 : index
    %c1_6 = arith.constant 1 : index
    %3 = vector.load %arg3[%c0_5, %c1, %c1_6] : memref<3x18x18xf32, #tpu.memory_space<vmem>>, vector<3x16x16xf32>
    tpu.vector_store %arg3[%c0_5, %c1, %c1_6], %2 {strides = array<i32>} : memref<3x18x18xf32, #tpu.memory_space<vmem>>, vector<3x16x16xf32>,
    %c0_7 = arith.constant 0 : index
    %c0_8 = arith.constant 0 : index
    %c0_9 = arith.constant 0 : index
    %4 = vector.load %arg3[%c0_7, %c0_8, %c0_9] : memref<3x18x18xf32, #tpu.memory_space<vmem>>, vector<3x18x18xf32>
    %5 = vector.extract_strided_slice %4 {offsets = [0, 0, 0], sizes = [3, 18, 16], strides = [1, 1, 1]} : vector<3x18x18xf32> to vector<3x18x16xf32>
    %cst_10 = arith.constant 0.274068624 : f32
    %6 = vector.broadcast %cst_10 : f32 to vector<3x18x16xf32>
    %7 = arith.mulf %6, %5 : vector<3x18x16xf32>
    %8 = vector.extract_strided_slice %4 {offsets = [0, 0, 1], sizes = [3, 18, 16], strides = [1, 1, 1]} : vector<3x18x18xf32> to vector<3x18x16xf32>
    %cst_11 = arith.constant 0.451862752 : f32
    %9 = vector.broadcast %cst_11 : f32 to vector<3x18x16xf32>
    %10 = arith.mulf %9, %8 : vector<3x18x16xf32>
    %11 = arith.addf %7, %10 : vector<3x18x16xf32>
    %12 = vector.extract_strided_slice %4 {offsets = [0, 0, 2], sizes = [3, 18, 16], strides = [1, 1, 1]} : vector<3x18x18xf32> to vector<3x18x16xf32>
    %cst_12 = arith.constant 0.274068624 : f32
    %13 = vector.broadcast %cst_12 : f32 to vector<3x18x16xf32>
    %14 = arith.mulf %13, %12 : vector<3x18x16xf32>
    %15 = arith.addf %11, %14 : vector<3x18x16xf32>
    %16 = vector.extract_strided_slice %15 {offsets = [0, 0, 0], sizes = [3, 16, 16], strides = [1, 1, 1]} : vector<3x18x16xf32> to vector<3x16x16xf32>
    %cst_13 = arith.constant 0.274068624 : f32
    %17 = vector.broadcast %cst_13 : f32 to vector<3x16x16xf32>
    %18 = arith.mulf %17, %16 : vector<3x16x16xf32>
    %19 = vector.extract_strided_slice %15 {offsets = [0, 1, 0], sizes = [3, 16, 16], strides = [1, 1, 1]} : vector<3x18x16xf32> to vector<3x16x16xf32>
    %cst_14 = arith.constant 0.451862752 : f32
    %20 = vector.broadcast %cst_14 : f32 to vector<3x16x16xf32>
    %21 = arith.mulf %20, %19 : vector<3x16x16xf32>
    %22 = arith.addf %18, %21 : vector<3x16x16xf32>
    %23 = vector.extract_strided_slice %15 {offsets = [0, 2, 0], sizes = [3, 16, 16], strides = [1, 1, 1]} : vector<3x18x16xf32> to vector<3x16x16xf32>
    %cst_15 = arith.constant 0.274068624 : f32
    %24 = vector.broadcast %cst_15 : f32 to vector<3x16x16xf32>
    %25 = arith.mulf %24, %23 : vector<3x16x16xf32>
    %26 = arith.addf %22, %25 : vector<3x16x16xf32>
    %c0_16 = arith.constant 0 : index
    %c0_17 = arith.constant 0 : index
    %c0_18 = arith.constant 0 : index
    %27 = vector.load %arg2[%c0_16, %c0_17, %c0_18] : memref<3x16x16xf32, #tpu.memory_space<vmem>>, vector<3x16x16xf32>
    tpu.vector_store %arg2[%c0_16, %c0_17, %c0_18], %26 {strides = array<i32>} : memref<3x16x16xf32, #tpu.memory_space<vmem>>, vector<3x16x16xf32>,
    return
  }
  func.func @transform_0(%arg0: i32) -> (i32, i32, i32) {
    %c0_i32 = arith.constant 0 : i32
    %c0_i32_0 = arith.constant 0 : i32
    %c0_i32_1 = arith.constant 0 : i32
    return %arg0, %c0_i32, %c0_i32_0 : i32, i32, i32
  }
  func.func @transform_1(%arg0: i32) -> (i32, i32, i32) {
    %c0_i32 = arith.constant 0 : i32
    %c0_i32_0 = arith.constant 0 : i32
    %c0_i32_1 = arith.constant 0 : i32
    return %arg0, %c0_i32, %c0_i32_0 : i32, i32, i32
  }
}

</mosaic_0001>

<llo_original>
// kernel: tpu_custom_call.1
$region0: #{tpu_custom_call.1}
  #allocation0 [shape = 'u32[]', space=smem, size = 0x4, offset = 0x4, fixed_abs, tag = 'smem constant byte address 0x4 - core index']
  #allocation1 [shape = 'u32[144,128]{1,0:T(1,128)}', space=vmem, size = 0x12000, scoped, tag = 'internal scratch']
  #allocation2 [shape = 'f32[3,18,18]{2,1,0:T(8,128)}', space=vmem, size = 0x9000, scoped, tag = 'scratch operand']
  %s0 = inlined_call_operand.hbm [shape: f32[6,16,16], index: 0, kind: input, shape index: {}]
  %s1 = inlined_call_operand.hbm [shape: f32[6,16,16], index: 1, kind: output, shape index: {}]
  %s2 = sld [smem:[#allocation0]]
  $region41: #{tpu_custom_call.1} parent=0
    _
  %s4 = ssub.s32 1, %s2
  %s5 = scalar_select 0, %s4, %s2
  $region1: #{tpu_custom_call.1} parent=0
    #allocation3 [shape = 'u8[49152]{0}', space=vmem, size = 0xc000, scoped, tag = 'input window, operand 0']
    #allocation4 [shape = 's32[2]{0}', space=sflag, size = 0x8, scoped, tag = 'scoped memory for tpu_custom_call.1']
    #allocation5 [shape = 's32[2]{0}', space=sflag, size = 0x8, scoped, tag = 'scoped memory for tpu_custom_call.1']
    #allocation6 [shape = 'u8[49152]{0}', space=vmem, size = 0xc000, scoped, tag = 'output window, operand 0']
    %6 = vsyncpa [#allocation4], 0
    %s7 = scalar_lea.sflag [#allocation4], 1
    %8 = vsyncpa %s7, 0
    %9 = vsyncpa [#allocation5], 0
    %s10 = scalar_lea.sflag [#allocation5], 1
    %11 = vsyncpa %s10, 0
    loop: start=0, step=1, limit=4
    $region2: #{tpu_custom_call.1} parent=1 // loop_pre_header
      _
    $region3: #{tpu_custom_call.1} parent=1 // loop_header
      %s13 = sphi 0, %s17
      %p14 = scmp.ge.s32.totalorder %s13, 4
      %s23 = sphi 0, %s25
      %s26 = sphi 0, %s23
      %s27 = sphi 0, %s26
      %s43 = sphi 0, %s27
      %s49 = sphi 0, %s51
      %s52 = sphi 0, %s49
      %s53 = sphi 0, %s52
      %s69 = sphi 0, %s53
    $region4: #{tpu_custom_call.1} parent=1 // loop_header_branch
      %16 = sbr.rel (%p14) target = $region8
    $region5: #{tpu_custom_call.1} parent=1 // loop_body
      %s18 = ssub.s32 %s13, 1
      %s19 = ssub.s32 %s13, 2
      %s20 = sadd.s32 %s13, 1
      %s21 = ssub.s32 %s13, %s20
      %p22 = scmp.eq.s32.totalorder %s21, 0
      %s24 = sadd.s32 %s23, 1
      %s25 = scalar_select %p22, %s23, %s24
      %p28 = pneg %p22
      %p29 = scmp.eq.s32.totalorder %s13, 1
      %p30 = por %p28, %p29
      %p31 = scmp.ne.s32.totalorder %s23, %s26
      %p32 = scmp.eq.s32.totalorder %s13, 0
      %p33 = por %p31, %p32
      %p34 = scmp.ne.s32.totalorder %s23, %s26
      %p35 = scmp.eq.s32.totalorder %s18, 1
      %p36 = por %p34, %p35
      %p37 = scmp.ne.s32.totalorder %s26, %s27
      %p38 = scmp.eq.s32.totalorder %s18, 0
      %p39 = por %p37, %p38
      %p40 = scmp.ne.s32.totalorder %s26, %s27
      %p41 = scmp.eq.s32.totalorder %s19, 1
      %p42 = por %p40, %p41
      %p44 = scmp.ne.s32.totalorder %s27, %s43
      %p45 = scmp.eq.s32.totalorder %s19, 0
      %p46 = por %p44, %p45
      %s47 = ssub.s32 %s13, %s20
      %p48 = scmp.eq.s32.totalorder %s47, 0
      %s50 = sadd.s32 %s49, 1
      %s51 = scalar_select %p48, %s49, %s50
      %p54 = pneg %p48
      %p55 = scmp.eq.s32.totalorder %s13, 1
      %p56 = por %p54, %p55
      %p57 = scmp.ne.s32.totalorder %s49, %s52
      %p58 = scmp.eq.s32.totalorder %s13, 0
      %p59 = por %p57, %p58
      %p60 = scmp.ne.s32.totalorder %s49, %s52
      %p61 = scmp.eq.s32.totalorder %s18, 1
      %p62 = por %p60, %p61
      %p63 = scmp.ne.s32.totalorder %s52, %s53
      %p64 = scmp.eq.s32.totalorder %s18, 0
      %p65 = por %p63, %p64
      %p66 = scmp.ne.s32.totalorder %s52, %s53
      %p67 = scmp.eq.s32.totalorder %s19, 1
      %p68 = por %p66, %p67
      %p70 = scmp.ne.s32.totalorder %s53, %s69
      %p71 = scmp.eq.s32.totalorder %s19, 0
      %p72 = por %p70, %p71
      %p73 = scmp.le.s32.totalorder 1, %s13
      %p74 = scmp.lt.s32.totalorder %s13, 3
      %p75 = pnand %p73, %p74
      %p76 = pneg %p75
      // Predicated region
      $region9: #{tpu_custom_call.1} parent=5 // pred_check
        _
      $region10: #{tpu_custom_call.1} parent=5 // pred_check_branch
        %78 = sbr.rel (%p75) target = $region12
      $region11: #{tpu_custom_call.1} parent=5 // pred_region
        %s79 = ssub.s32 %s13, 1
      $region12: #{tpu_custom_call.1} parent=5 // pred_fallthru
        _
      %p80 = scmp.lt.s32.totalorder %s13, 2
      // Predicated region
      $region13: #{tpu_custom_call.1} parent=5 // pred_check
        %p81 = pneg %p80
      $region14: #{tpu_custom_call.1} parent=5 // pred_check_branch
        %83 = sbr.rel (%p81) target = $region16
      $region15: #{tpu_custom_call.1} parent=5 // pred_region
        // Predicated region
        $region17: #{tpu_custom_call.1} parent=15 // pred_check
          %p84 = pneg %p33
        $region18: #{tpu_custom_call.1} parent=15 // pred_check_branch
          %86 = sbr.rel (%p84) target = $region20
        $region19: #{tpu_custom_call.1} parent=15 // pred_region
          %s87 = sand.u32 %s23, 1
          %s88 = scalar_lea.sflag [#allocation4], %s87
          %s89 = sand.u32 %s23, 1
          %s90 = smul.addr %s89, 48
          %s91 = scalar_lea.vmem [#allocation3], %s90
          %s92 = smul.u32 3, %s13
          %s94 = ssub.s32 768, 768
          %95 = vsyncadd %s88, %s94
          %s96 = smul.addr %s92, 2
          %s97 = smul.addr %s96, 128
          %s98 = scalar_lea.hbm %s0, %s97
          %s99 = sshll.u32 %s91, 4
          %s100 = int_to_ptr.vmem [resolvable:$true] %s99
          %105 = dma.hbm_to_vmem [thread:$0]  %s98, 768, %s100, %s88, 128, 128, 8
        $region20: #{tpu_custom_call.1} parent=15 // pred_fallthru
          _
      $region16: #{tpu_custom_call.1} parent=5 // pred_fallthru
        _
      %p106 = scmp.le.s32.totalorder 1, %s13
      %p107 = scmp.lt.s32.totalorder %s13, 3
      %p108 = pnand %p106, %p107
      %p109 = pneg %p108
      // Predicated region
      $region21: #{tpu_custom_call.1} parent=5 // pred_check
        _
      $region22: #{tpu_custom_call.1} parent=5 // pred_check_branch
        %111 = sbr.rel (%p108) target = $region24
      $region23: #{tpu_custom_call.1} parent=5 // pred_region
        %s112 = ssub.s32 %s13, 1
        %s113 = sand.u32 %s26, 1
        %s114 = scalar_lea.sflag [#allocation4], %s113
        %s115 = sand.u32 %s26, 1
        %s116 = smul.addr %s115, 48
        %s117 = scalar_lea.vmem [#allocation3], %s116
        // Predicated region
        $region25: #{tpu_custom_call.1} parent=23 // pred_check
          %p118 = pneg %p39
        $region26: #{tpu_custom_call.1} parent=23 // pred_check_branch
          %120 = sbr.rel (%p118) target = $region28
        $region27: #{tpu_custom_call.1} parent=23 // pred_region
          %121 = dma.done %s114, 768
        $region28: #{tpu_custom_call.1} parent=23 // pred_fallthru
          _
        %s122 = sand.u32 %s26, 1
        %s123 = scalar_lea.sflag [#allocation4], %s122
        %s124 = sand.u32 %s26, 1
        %s125 = smul.addr %s124, 48
        %s126 = scalar_lea.vmem [#allocation3], %s125
        %p127 = pneg %p39
        %p128 = pneg %p36
        %p129 = pneg %p65
        %p130 = pneg %p62
        %s131 = sand.u32 %s52, 1
        %s132 = scalar_lea.sflag [#allocation5], %s131
        %s133 = sand.u32 %s52, 1
        %s134 = smul.addr %s133, 48
        %s135 = scalar_lea.vmem [#allocation6], %s134
        %s136 = smul.u32 3, %s18
        %s137 = smul.u32 3, %s18
        %vm138 = vcmask 146432
        %139 = vst.msk [vmem:[#allocation2] sm:$0xff] %vm138, 0.0
        %140 = vst.msk [vmem:[#allocation2 + $0x8] sm:$0xff] %vm138, 0.0
        %vm141 = vcmask 140288
        %142 = vst.msk [vmem:[#allocation2 + $0x10] sm:$0x3] %vm141, 0.0
        %143 = vst.msk [vmem:[#allocation2 + $0x18] sm:$0xff] %vm138, 0.0
        %144 = vst.msk [vmem:[#allocation2 + $0x20] sm:$0xff] %vm138, 0.0
        %145 = vst.msk [vmem:[#allocation2 + $0x28] sm:$0x3] %vm141, 0.0
        %146 = vst.msk [vmem:[#allocation2 + $0x30] sm:$0xff] %vm138, 0.0
        %147 = vst.msk [vmem:[#allocation2 + $0x38] sm:$0xff] %vm138, 0.0
        %148 = vst.msk [vmem:[#allocation2 + $0x40] sm:$0x3] %vm141, 0.0
        %v149 = vld [vmem:[%s117] sm:$0xff]
        %v150 = vld [vmem:[%s117 + $0x8] sm:$0xff]
        %v151 = vld [vmem:[%s117 + $0x10] sm:$0xff]
        %v152 = vld [vmem:[%s117 + $0x18] sm:$0xff]
        %v153 = vld [vmem:[%s117 + $0x20] sm:$0xff]
        %v154 = vld [vmem:[%s117 + $0x28] sm:$0xff]
        %161 = vrot.lane.b32.xlu0 %v149, 1
        %v162 = vpop.permute.xlu0 %161
        %163 = vrot.lane.b32.xlu0 %v150, 1
        %v164 = vpop.permute.xlu0 %163
        %165 = vrot.lane.b32.xlu0 %v151, 1
        %v166 = vpop.permute.xlu0 %165
        %167 = vrot.lane.b32.xlu0 %v152, 1
        %v168 = vpop.permute.xlu0 %167
        %169 = vrot.lane.b32.xlu0 %v153, 1
        %v170 = vpop.permute.xlu0 %169
        %171 = vrot.lane.b32.xlu0 %v154, 1
        %v172 = vpop.permute.xlu0 %171
        %vm179 = vcmask 138248
        %180 = vst.msk [vmem:[#allocation2 + $0x1] sm:$0xff] %vm179, %v162
        %181 = vst.msk [vmem:[#allocation2 + $0x9] sm:$0xff] %vm179, %v164
        %182 = vst.msk [vmem:[#allocation2 + $0x19] sm:$0xff] %vm179, %v166
        %183 = vst.msk [vmem:[#allocation2 + $0x21] sm:$0xff] %vm179, %v168
        %184 = vst.msk [vmem:[#allocation2 + $0x31] sm:$0xff] %vm179, %v170
        %185 = vst.msk [vmem:[#allocation2 + $0x39] sm:$0xff] %vm179, %v172
        %v186 = vld [vmem:[#allocation2] sm:$0xff]
        %v187 = vld [vmem:[#allocation2 + $0x8] sm:$0xff]
        %v188 = vld [vmem:[#allocation2 + $0x10] sm:$0x3]
        %v189 = vld [vmem:[#allocation2 + $0x18] sm:$0xff]
        %v190 = vld [vmem:[#allocation2 + $0x20] sm:$0xff]
        %v191 = vld [vmem:[#allocation2 + $0x28] sm:$0x3]
        %v192 = vld [vmem:[#allocation2 + $0x30] sm:$0xff]
        %v193 = vld [vmem:[#allocation2 + $0x38] sm:$0xff]
        %v194 = vld [vmem:[#allocation2 + $0x40] sm:$0x3]
        %v195 = vmul.f32 %v186, 0.27406862
        %v196 = vmul.f32 %v187, 0.27406862
        %v197 = vmul.f32 %v188, 0.27406862
        %v198 = vmul.f32 %v189, 0.27406862
        %v199 = vmul.f32 %v190, 0.27406862
        %v200 = vmul.f32 %v191, 0.27406862
        %v201 = vmul.f32 %v192, 0.27406862
        %v202 = vmul.f32 %v193, 0.27406862
        %v203 = vmul.f32 %v194, 0.27406862
        %v204 = vmul.f32 %v186, 0.45186275
        %v205 = vmul.f32 %v187, 0.45186275
        %v206 = vmul.f32 %v188, 0.45186275
        %v207 = vmul.f32 %v189, 0.45186275
        %v208 = vmul.f32 %v190, 0.45186275
        %v209 = vmul.f32 %v191, 0.45186275
        %v210 = vmul.f32 %v192, 0.45186275
        %v211 = vmul.f32 %v193, 0.45186275
        %v212 = vmul.f32 %v194, 0.45186275
        %222 = vrot.lane.b32.xlu0 %v204, 127
        %v223 = vpop.permute.xlu0 %222
        %224 = vrot.lane.b32.xlu0 %v205, 127
        %v225 = vpop.permute.xlu0 %224
        %226 = vrot.lane.b32.xlu0 %v206, 127
        %v227 = vpop.permute.xlu0 %226
        %228 = vrot.lane.b32.xlu0 %v207, 127
        %v229 = vpop.permute.xlu0 %228
        %230 = vrot.lane.b32.xlu0 %v208, 127
        %v231 = vpop.permute.xlu0 %230
        %232 = vrot.lane.b32.xlu0 %v209, 127
        %v233 = vpop.permute.xlu0 %232
        %234 = vrot.lane.b32.xlu0 %v210, 127
        %v235 = vpop.permute.xlu0 %234
        %236 = vrot.lane.b32.xlu0 %v211, 127
        %v237 = vpop.permute.xlu0 %236
        %238 = vrot.lane.b32.xlu0 %v212, 127
        %v239 = vpop.permute.xlu0 %238
        %v249 = vadd.f32 %v195, %v223
        %v250 = vadd.f32 %v196, %v225
        %v251 = vadd.f32 %v197, %v227
        %v252 = vadd.f32 %v198, %v229
        %v253 = vadd.f32 %v199, %v231
        %v254 = vadd.f32 %v200, %v233
        %v255 = vadd.f32 %v201, %v235
        %v256 = vadd.f32 %v202, %v237
        %v257 = vadd.f32 %v203, %v239
        %267 = vrot.lane.b32.xlu0 %v195, 126
        %v268 = vpop.permute.xlu0 %267
        %269 = vrot.lane.b32.xlu0 %v196, 126
        %v270 = vpop.permute.xlu0 %269
        %271 = vrot.lane.b32.xlu0 %v197, 126
        %v272 = vpop.permute.xlu0 %271
        %273 = vrot.lane.b32.xlu0 %v198, 126
        %v274 = vpop.permute.xlu0 %273
        %275 = vrot.lane.b32.xlu0 %v199, 126
        %v276 = vpop.permute.xlu0 %275
        %277 = vrot.lane.b32.xlu0 %v200, 126
        %v278 = vpop.permute.xlu0 %277
        %279 = vrot.lane.b32.xlu0 %v201, 126
        %v280 = vpop.permute.xlu0 %279
        %281 = vrot.lane.b32.xlu0 %v202, 126
        %v282 = vpop.permute.xlu0 %281
        %283 = vrot.lane.b32.xlu0 %v203, 126
        %v284 = vpop.permute.xlu0 %283
        %v294 = vadd.f32 %v249, %v268
        %v295 = vadd.f32 %v250, %v270
        %v296 = vadd.f32 %v251, %v272
        %v297 = vadd.f32 %v252, %v274
        %v298 = vadd.f32 %v253, %v276
        %v299 = vadd.f32 %v254, %v278
        %v300 = vadd.f32 %v255, %v280
        %v301 = vadd.f32 %v256, %v282
        %v302 = vadd.f32 %v257, %v284
        %v303 = vmul.f32 %v294, 0.27406862
        %v304 = vmul.f32 %v295, 0.27406862
        %v305 = vmul.f32 %v297, 0.27406862
        %v306 = vmul.f32 %v298, 0.27406862
        %v307 = vmul.f32 %v300, 0.27406862
        %v308 = vmul.f32 %v301, 0.27406862
        %v309 = vmul.f32 %v294, 0.45186275
        %v310 = vmul.f32 %v295, 0.45186275
        %v311 = vmul.f32 %v296, 0.45186275
        %v312 = vmul.f32 %v297, 0.45186275
        %v313 = vmul.f32 %v298, 0.45186275
        %v314 = vmul.f32 %v299, 0.45186275
        %v315 = vmul.f32 %v300, 0.45186275
        %v316 = vmul.f32 %v301, 0.45186275
        %v317 = vmul.f32 %v302, 0.45186275
        %vm327 = vcmask 1046528
        %v328 = vrot.slane %v309, 1
        %v329 = vrot.slane %v310, 1
        %v330 = vsel %vm327, %v328, %v329
        %v331 = vrot.slane %v311, 1
        %v332 = vsel %vm327, %v329, %v331
        %v333 = vrot.slane %v312, 1
        %v334 = vrot.slane %v313, 1
        %v335 = vsel %vm327, %v333, %v334
        %v336 = vrot.slane %v314, 1
        %v337 = vsel %vm327, %v334, %v336
        %v338 = vrot.slane %v315, 1
        %v339 = vrot.slane %v316, 1
        %v340 = vsel %vm327, %v338, %v339
        %v341 = vrot.slane %v317, 1
        %v342 = vsel %vm327, %v339, %v341
        %v349 = vadd.f32 %v303, %v330
        %v350 = vadd.f32 %v304, %v332
        %v351 = vadd.f32 %v305, %v335
        %v352 = vadd.f32 %v306, %v337
        %v353 = vadd.f32 %v307, %v340
        %v354 = vadd.f32 %v308, %v342
        %v355 = vmul.f32 %v296, 0.27406862
        %v356 = vmul.f32 %v299, 0.27406862
        %v357 = vmul.f32 %v302, 0.27406862
        %vm367 = vcmask 1045504
        %v368 = vrot.slane %v303, 2
        %v369 = vrot.slane %v304, 2
        %v370 = vsel %vm367, %v368, %v369
        %v371 = vrot.slane %v355, 2
        %v372 = vsel %vm367, %v369, %v371
        %v373 = vrot.slane %v305, 2
        %v374 = vrot.slane %v306, 2
        %v375 = vsel %vm367, %v373, %v374
        %v376 = vrot.slane %v356, 2
        %v377 = vsel %vm367, %v374, %v376
        %v378 = vrot.slane %v307, 2
        %v379 = vrot.slane %v308, 2
        %v380 = vsel %vm367, %v378, %v379
        %v381 = vrot.slane %v357, 2
        %v382 = vsel %vm367, %v379, %v381
        %v389 = vadd.f32 %v349, %v370
        %v390 = vadd.f32 %v350, %v372
        %v391 = vadd.f32 %v351, %v375
        %v392 = vadd.f32 %v352, %v377
        %v393 = vadd.f32 %v353, %v380
        %v394 = vadd.f32 %v354, %v382
        %vm395 = vcmask 130048
        %396 = vst.msk [vmem:[%s135] sm:$0xff] %vm395, %v389
        %397 = vst.msk [vmem:[%s135 + $0x8] sm:$0xff] %vm395, %v390
        %398 = vst.msk [vmem:[%s135 + $0x10] sm:$0xff] %vm395, %v391
        %399 = vst.msk [vmem:[%s135 + $0x18] sm:$0xff] %vm395, %v392
        %400 = vst.msk [vmem:[%s135 + $0x20] sm:$0xff] %vm395, %v393
        %401 = vst.msk [vmem:[%s135 + $0x28] sm:$0xff] %vm395, %v394
        %s402 = sand.u32 %s52, 1
        %s403 = scalar_lea.sflag [#allocation5], %s402
        %s404 = sand.u32 %s52, 1
        %s405 = smul.addr %s404, 48
        %s406 = scalar_lea.vmem [#allocation6], %s405
        // Predicated region
        $region29: #{tpu_custom_call.1} parent=23 // pred_check
          %p407 = pneg %p62
        $region30: #{tpu_custom_call.1} parent=23 // pred_check_branch
          %409 = sbr.rel (%p407) target = $region32
        $region31: #{tpu_custom_call.1} parent=23 // pred_region
          %s410 = smul.u32 3, %s18
          %s412 = ssub.s32 768, 768
          %413 = vsyncadd %s403, %s412
          %s414 = smul.addr %s410, 2
          %s415 = smul.addr %s414, 128
          %s416 = scalar_lea.hbm %s1, %s415
          %s417 = sshll.u32 %s406, 4
          %s418 = int_to_ptr.vmem [resolvable:$true] %s417
          %423 = dma.vmem_to_hbm [thread:$0]  %s418, 768, %s416, %s403, 128, 128, 8
        $region32: #{tpu_custom_call.1} parent=23 // pred_fallthru
          _
      $region24: #{tpu_custom_call.1} parent=5 // pred_fallthru
        _
      %p424 = scmp.le.s32.totalorder 2, %s13
      // Predicated region
      $region33: #{tpu_custom_call.1} parent=5 // pred_check
        %p425 = pneg %p424
      $region34: #{tpu_custom_call.1} parent=5 // pred_check_branch
        %427 = sbr.rel (%p425) target = $region36
      $region35: #{tpu_custom_call.1} parent=5 // pred_region
        %s428 = ssub.s32 %s13, 2
        // Predicated region
        $region37: #{tpu_custom_call.1} parent=35 // pred_check
          %p429 = pneg %p68
        $region38: #{tpu_custom_call.1} parent=35 // pred_check_branch
          %431 = sbr.rel (%p429) target = $region40
        $region39: #{tpu_custom_call.1} parent=35 // pred_region
          %s432 = sand.u32 %s53, 1
          %s433 = scalar_lea.sflag [#allocation5], %s432
          %s434 = sand.u32 %s53, 1
          %s435 = smul.addr %s434, 48
          %s436 = scalar_lea.vmem [#allocation6], %s435
          %437 = dma.done %s433, 768
        $region40: #{tpu_custom_call.1} parent=35 // pred_fallthru
          _
      $region36: #{tpu_custom_call.1} parent=5 // pred_fallthru
        _
    $region6: #{tpu_custom_call.1} parent=1 // loop_footer
      %s17 = sadd.s32 1, %s13
    $region7: #{tpu_custom_call.1} parent=1 // loop_footer_branch
      %12 = sbr.rel target = $region3
    $region8: #{tpu_custom_call.1} parent=1 // loop_exit
      _
    %438 = vsyncpa [#allocation4], 1
    %s439 = scalar_lea.sflag [#allocation4], 1
    %440 = vsyncpa %s439, 1
    %441 = vsyncpa [#allocation5], 1
    %s442 = scalar_lea.sflag [#allocation5], 1
    %443 = vsyncpa %s442, 1

</llo_original>
